<compile_context>
chip_gen: v7x
topology: tpu7x:2x2x1
jax: 0.10.0
libtpu: 0.0.40
codegen_flags: <defaults>
</compile_context>

<pallas_src>
import jax
import jax.numpy as jnp
from jax.experimental import pallas as pl
from jax.experimental.pallas import tpu as pltpu

LANE = 128      # lane (last-dim) width of a vreg
SUBLANE = 8     # f32 sublane width (16 for packed bf16)


def _round_up(n, m):
    return ((n + m - 1) // m) * m


def _pad2(a, rows, cols):
    return jnp.pad(a, ((0, rows - a.shape[0]), (0, cols - a.shape[1])))


def _vmem_budget_bytes():
    """~3/4 of this chip's VMEM (96 MiB-class on v5e/v6e, 48 MiB on v7x)."""
    cap = None
    try:
        cap = getattr(pltpu.get_tpu_info(), "vmem_capacity_bytes", None)
    except Exception:
        cap = None
    if not cap:
        cap = 64 * 1024 * 1024          # conservative fallback: v7x physical
    return max(32 * 1024 * 1024, int(cap) * 3 // 4)


def _vmem_estimate(tile_b, in_f, hid_p, out_p, out_f, x_bytes, w_bytes):
    """Per-step VMEM: double-buffered x/out tiles, single-buffered weights
    (pl.Buffered(1)), f32 intermediates, 1 MiB slack."""
    io = 2 * tile_b * in_f * x_bytes            # pipelined x tiles
    io += 2 * tile_b * out_f * 4                # pipelined output tiles
    wts = (in_f * hid_p + hid_p * out_p) * w_bytes + (hid_p + out_f) * 4
    interm = tile_b * (hid_p + out_p) * 4       # f32 h + accumulator temporaries
    return io + wts + interm + (1 << 20)


def linq_kernel(x_ref, w1_ref, b1_ref, w2_ref, b2_ref, o_ref):
    # Cast the activation tile to the weight dtype for the MXU (no-op for f32).
    x = x_ref[...].astype(w1_ref.dtype)
    # Layer 1: MXU matmul, f32 accumulation; bias + ReLU in f32 on the VPU.
    h = jnp.dot(x, w1_ref[...], preferred_element_type=jnp.float32)
    h = jnp.maximum(h + b1_ref[...], 0.0)
    # Layer 2: fully (8,128)-aligned matmul on the padded weight, then slice
    # the valid output lanes so the HBM store is only out_features wide.
    acc = jnp.dot(h.astype(w2_ref.dtype), w2_ref[...],
                  preferred_element_type=jnp.float32)
    out_f = o_ref.shape[1]
    o_ref[...] = (acc[:, :out_f] + b2_ref[...]).astype(o_ref.dtype)


def prepare_params(w1, b1, w2, b2, compute_dtype=None):
    """One-time weight/bias prep, hoisted out of the per-forward hot path.

    Pads the (tiny) weights' hidden/output dims to the 128-lane width and
    optionally casts them to a narrower MXU dtype (e.g. jnp.bfloat16 to halve
    weight HBM traffic on v5e/v6e/v7x).  Biases stay f32; b2 stays unpadded.
    Weights are stored pre-transposed: w1 (in, hidden), w2 (hidden, out).
    """
    in_f, hid = w1.shape
    out_f = w2.shape[1]
    hid_p = _round_up(hid, LANE)
    out_p = _round_up(out_f, LANE)
    wdtype = jnp.dtype(compute_dtype) if compute_dtype is not None else w1.dtype
    w1p = _pad2(w1, in_f, hid_p).astype(wdtype)                     # (in_f, hid_p)
    w2p = _pad2(w2, hid_p, out_p).astype(wdtype)                    # (hid_p, out_p)
    b1p = _pad2(jnp.asarray(b1, jnp.float32).reshape(1, -1), 1, hid_p)
    b2p = jnp.asarray(b2, jnp.float32).reshape(1, -1)               # (1, out_f)
    return w1p, b1p, w2p, b2p


def linq_forward(x, params, *, tile_b=2048):
    """relu(x @ w1 + b1) @ w2 + b2 with params from prepare_params()."""
    w1p, b1p, w2p, b2p = params
    B, in_f = x.shape
    assert w1p.shape[0] == in_f, "x feature dim must match prepared w1"
    hid_p = w1p.shape[1]
    out_p = w2p.shape[1]
    out_f = b2p.shape[1]

    x_bytes = jnp.dtype(x.dtype).itemsize
    w_bytes = jnp.dtype(w1p.dtype).itemsize
    # Batch-tile sublane granularity follows the packed dtype (bf16 -> 16 rows).
    sub = 16 if min(x_bytes, w_bytes) == 2 else SUBLANE

    budget = _vmem_budget_bytes()
    tile_b = max(sub, min(int(tile_b), _round_up(B, sub)))
    # >= 2 grid steps when the batch allows, so v7x's two TensorCores both get
    # work from the "parallel" batch axis (no-op on single-TC v5e/v6e).
    tile_b = min(tile_b, max(sub, _round_up(pl.cdiv(B, 2), sub)))
    tile_b = _round_up(tile_b, sub)
    while (tile_b > sub and
           _vmem_estimate(tile_b, in_f, hid_p, out_p, out_f, x_bytes, w_bytes)
           > budget):
        tile_b = max(sub, _round_up(tile_b // 2, sub))

    grid = (pl.cdiv(B, tile_b),)            # ragged last block handled by Pallas
    resident = pl.Buffered(1)               # weights/biases: single VMEM buffer

    return pl.pallas_call(
        linq_kernel,
        out_shape=jax.ShapeDtypeStruct((B, out_f), x.dtype),
        grid_spec=pltpu.PrefetchScalarGridSpec(
            num_scalar_prefetch=0,
            grid=grid,
            in_specs=[
                # x: unpadded, tiled over batch, double-buffered by default.
                # (Bump to pipeline_mode=pl.Buffered(3) if xprof shows exposed
                # DMA per grid step.)
                pl.BlockSpec((tile_b, in_f), lambda i: (i, 0)),
                # Weights/biases: constant index_map -> VMEM-resident, and
                # single-buffered (no redundant second DMA buffer).
                pl.BlockSpec((in_f, hid_p), lambda i: (0, 0),
                             pipeline_mode=resident),
                pl.BlockSpec((1, hid_p), lambda i: (0, 0),
                             pipeline_mode=resident),
                pl.BlockSpec((hid_p, out_p), lambda i: (0, 0),
                             pipeline_mode=resident),
                pl.BlockSpec((1, out_f), lambda i: (0, 0),
                             pipeline_mode=resident),
            ],
            # Unpadded output: only out_f*itemsize bytes/row written to HBM,
            # and no post-kernel slice copy.
            out_specs=pl.BlockSpec((tile_b, out_f), lambda i: (i, 0)),
        ),
        compiler_params=pltpu.CompilerParams(
            dimension_semantics=("parallel",),
            vmem_limit_bytes=int(budget),
        ),
    )(x, w1p, b1p, w2p, b2p)


def init_params(key, input_size, hidden_size, output_size, dtype=jnp.float32):
    """Deterministic init mimicking PyTorch nn.Linear default (U(+-1/sqrt(fan_in)))."""
    k1, k2, k3, k4 = jax.random.split(key, 4)
    bound1 = 1.0 / (input_size ** 0.5)
    bound2 = 1.0 / (hidden_size ** 0.5)
    # Stored already transposed: (in, out).
    w1 = jax.random.uniform(k1, (input_size, hidden_size), dtype, -bound1, bound1)
    b1 = jax.random.uniform(k2, (1, hidden_size), dtype, -bound1, bound1)
    w2 = jax.random.uniform(k3, (hidden_size, output_size), dtype, -bound2, bound2)
    b2 = jax.random.uniform(k4, (1, output_size), dtype, -bound2, bound2)
    return w1, b1, w2, b2


def reference_forward(x, w1, b1, w2, b2):
    h = jnp.maximum(x @ w1 + b1, 0.0)
    return h @ w2 + b2


# TODO(synk): LinQNetwork.save() (torch.save of the state_dict) is host-side
# file I/O with no Pallas equivalent; omitted.

if __name__ == "__main__":
    key = jax.random.PRNGKey(0)
    k_x, k_p = jax.random.split(key)

    batch, input_size, hidden_size, output_size = 2, 16, 32, 4
    x = jax.random.normal(k_x, (batch, input_size), jnp.float32)
    w1, b1, w2, b2 = init_params(k_p, input_size, hidden_size, output_size)
    ref = reference_forward(x, w1, b1, w2, b2)

    # f32 path (exact vs. reference).  prepare_params is the one-time hoisted
    # weight pad/cast; reuse it across calls.
    params_f32 = prepare_params(w1, b1, w2, b2)
    out = jax.block_until_ready(linq_forward(x, params_f32))
    assert out.shape == (batch, output_size)
    assert jnp.allclose(out, ref, atol=1e-5, rtol=1e-5)

    # bf16-weight MXU path (halves weight HBM traffic on v5e/v6e/v7x); f32
    # accumulation + f32 epilogue, so only a loose tolerance is needed.
    params_bf16 = prepare_params(w1, b1, w2, b2, compute_dtype=jnp.bfloat16)
    out_bf16 = jax.block_until_ready(linq_forward(x, params_bf16))
    assert out_bf16.shape == (batch, output_size)
    assert jnp.allclose(out_bf16, ref, atol=5e-2, rtol=5e-2)

    # Larger, non-multiple batch: exercises the >=2-step grid (both v7x TCs)
    # and the ragged last block with no wrapper-side batch padding.
    xb = jax.random.normal(k_x, (300, input_size), jnp.float32)
    outb = jax.block_until_ready(linq_forward(xb, params_f32, tile_b=128))
    refb = reference_forward(xb, w1, b1, w2, b2)
    assert outb.shape == (300, output_size)
    assert jnp.allclose(outb, refb, atol=1e-5, rtol=1e-5)

    print("KERNEL_OK")
</pallas_src>

<mosaic_0001>
module attributes {stable_mosaic.version = 11 : i64} {
  func.func @linq_kernel(%arg0: i32, %arg1: memref<8x16xf32, #tpu.memory_space<vmem>>, %arg2: memref<16x128xf32, #tpu.memory_space<vmem>>, %arg3: memref<1x128xf32, #tpu.memory_space<vmem>>, %arg4: memref<128x128xf32, #tpu.memory_space<vmem>>, %arg5: memref<1x4xf32, #tpu.memory_space<vmem>>, %arg6: memref<8x4xf32, #tpu.memory_space<vmem>>) attributes {dimension_semantics = [#tpu.dimension_semantics<parallel>], iteration_bounds = array<i64: 1>, scalar_prefetch = 0 : i64, scratch_operands = 0 : i64, tpu.core_type = #tpu.core_type<tc>, window_params = [{transform_indices = @transform_0, window_bounds = array<i64: 8, 16>}, {pipeline_mode = #tpu.pipeline_mode<synchronous>, transform_indices = @transform_1, window_bounds = array<i64: 16, 128>}, {pipeline_mode = #tpu.pipeline_mode<synchronous>, transform_indices = @transform_2, window_bounds = array<i64: 1, 128>}, {pipeline_mode = #tpu.pipeline_mode<synchronous>, transform_indices = @transform_3, window_bounds = array<i64: 128, 128>}, {pipeline_mode = #tpu.pipeline_mode<synchronous>, transform_indices = @transform_4, window_bounds = array<i64: 1, 4>}, {transform_indices = @transform_5, window_bounds = array<i64: 8, 4>}]} {
    %c0 = arith.constant 0 : index
    %c0_0 = arith.constant 0 : index
    %0 = vector.load %arg1[%c0, %c0_0] : memref<8x16xf32, #tpu.memory_space<vmem>>, vector<8x16xf32>
    %c0_1 = arith.constant 0 : index
    %c0_2 = arith.constant 0 : index
    %1 = vector.load %arg2[%c0_1, %c0_2] : memref<16x128xf32, #tpu.memory_space<vmem>>, vector<16x128xf32>
    %cst = arith.constant dense<0.000000e+00> : vector<8x128xf32>
    %2 = tpu.matmul %0, %1, %cst {dimension_numbers = #tpu.dot_dimension_numbers<[1], [0], [0], [1], [0, 0, 1, 1], [], []>} : vector<8x16xf32>, vector<16x128xf32>, vector<8x128xf32> -> vector<8x128xf32>
    %c0_3 = arith.constant 0 : index
    %c0_4 = arith.constant 0 : index
    %3 = vector.load %arg3[%c0_3, %c0_4] : memref<1x128xf32, #tpu.memory_space<vmem>>, vector<1x128xf32>
    %4 = vector.broadcast %3 : vector<1x128xf32> to vector<8x128xf32>
    %5 = arith.addf %2, %4 : vector<8x128xf32>
    %cst_5 = arith.constant 0.000000e+00 : f32
    %6 = vector.broadcast %cst_5 : f32 to vector<8x128xf32>
    %7 = arith.maximumf %5, %6 : vector<8x128xf32>
    %c0_6 = arith.constant 0 : index
    %c0_7 = arith.constant 0 : index
    %8 = vector.load %arg4[%c0_6, %c0_7] : memref<128x128xf32, #tpu.memory_space<vmem>>, vector<128x128xf32>
    %cst_8 = arith.constant dense<0.000000e+00> : vector<8x128xf32>
    %9 = tpu.matmul %7, %8, %cst_8 {dimension_numbers = #tpu.dot_dimension_numbers<[1], [0], [0], [1], [0, 0, 1, 1], [], []>} : vector<8x128xf32>, vector<128x128xf32>, vector<8x128xf32> -> vector<8x128xf32>
    %10 = vector.extract_strided_slice %9 {offsets = [0, 0], sizes = [8, 4], strides = [1, 1]} : vector<8x128xf32> to vector<8x4xf32>
    %c0_9 = arith.constant 0 : index
    %c0_10 = arith.constant 0 : index
    %11 = vector.load %arg5[%c0_9, %c0_10] : memref<1x4xf32, #tpu.memory_space<vmem>>, vector<1x4xf32>
    %12 = vector.broadcast %11 : vector<1x4xf32> to vector<8x4xf32>
    %13 = arith.addf %10, %12 : vector<8x4xf32>
    %c0_11 = arith.constant 0 : index
    %c0_12 = arith.constant 0 : index
    %14 = vector.load %arg6[%c0_11, %c0_12] : memref<8x4xf32, #tpu.memory_space<vmem>>, vector<8x4xf32>
    tpu.vector_store %arg6[%c0_11, %c0_12], %13 {strides = array<i32>} : memref<8x4xf32, #tpu.memory_space<vmem>>, vector<8x4xf32>,
    return
  }
  func.func @transform_0(%arg0: i32) -> (i32, i32) {
    %c0_i32 = arith.constant 0 : i32
    %c0_i32_0 = arith.constant 0 : i32
    return %arg0, %c0_i32 : i32, i32
  }
  func.func @transform_1(%arg0: i32) -> (i32, i32) {
    %c0_i32 = arith.constant 0 : i32
    %c0_i32_0 = arith.constant 0 : i32
    %c0_i32_1 = arith.constant 0 : i32
    return %c0_i32, %c0_i32_0 : i32, i32
  }
  func.func @transform_2(%arg0: i32) -> (i32, i32) {
    %c0_i32 = arith.constant 0 : i32
    %c0_i32_0 = arith.constant 0 : i32
    %c0_i32_1 = arith.constant 0 : i32
    return %c0_i32, %c0_i32_0 : i32, i32
  }
  func.func @transform_3(%arg0: i32) -> (i32, i32) {
    %c0_i32 = arith.constant 0 : i32
    %c0_i32_0 = arith.constant 0 : i32
    %c0_i32_1 = arith.constant 0 : i32
    return %c0_i32, %c0_i32_0 : i32, i32
  }
  func.func @transform_4(%arg0: i32) -> (i32, i32) {
    %c0_i32 = arith.constant 0 : i32
    %c0_i32_0 = arith.constant 0 : i32
    %c0_i32_1 = arith.constant 0 : i32
    return %c0_i32, %c0_i32_0 : i32, i32
  }
  func.func @transform_5(%arg0: i32) -> (i32, i32) {
    %c0_i32 = arith.constant 0 : i32
    %c0_i32_0 = arith.constant 0 : i32
    return %arg0, %c0_i32 : i32, i32
  }
}

</mosaic_0001>

<llo_original>
// kernel: tpu_custom_call.1
$region0: #{tpu_custom_call.1}
  #allocation0 [shape = 'u32[]', space=smem, size = 0x4, offset = 0x4, fixed_abs, tag = 'smem constant byte address 0x4 - core index']
  #allocation1 [shape = 'u32[144,128]{1,0:T(1,128)}', space=vmem, size = 0x12000, scoped, tag = 'internal scratch']
  %s0 = inlined_call_operand.hbm [shape: f32[2,16], index: 0, kind: input, shape index: {}]
  %s1 = inlined_call_operand.hbm [shape: f32[16,128], index: 1, kind: input, shape index: {}]
  %s2 = inlined_call_operand.vmem [shape: f32[1,128], index: 2, kind: input, shape index: {}]
  %s3 = inlined_call_operand.hbm [shape: f32[128,128], index: 3, kind: input, shape index: {}]
  %s4 = inlined_call_operand.vmem [shape: f32[1,4], index: 4, kind: input, shape index: {}]
  %s5 = inlined_call_operand.hbm [shape: f32[2,4], index: 5, kind: output, shape index: {}]
  %s6 = sld [smem:[#allocation0]]
  $region42: #{tpu_custom_call.1} parent=0
    _
  %s8 = ssub.s32 1, %s6
  %s9 = scalar_select 0, %s8, %s6
  $region1: #{tpu_custom_call.1} parent=0
    #allocation2 [shape = 'u8[4096]{0}', space=vmem, size = 0x1000, scoped, tag = 'input window, operand 0, single buffered']
    #allocation3 [shape = 's32[1]{0}', space=sflag, size = 0x4, scoped, tag = 'scoped memory for tpu_custom_call.1']
    #allocation4 [shape = 's32[1]{0}', space=sflag, size = 0x4, scoped, tag = 'scoped memory for tpu_custom_call.1']
    #allocation5 [shape = 'u8[8192]{0}', space=vmem, size = 0x2000, scoped, tag = 'input window, operand 1, single buffered']
    #allocation6 [shape = 's32[1]{0}', space=sflag, size = 0x4, scoped, tag = 'scoped memory for tpu_custom_call.1']
    #allocation7 [shape = 'u8[65536]{0}', space=vmem, size = 0x10000, scoped, tag = 'input window, operand 3, single buffered']
    #allocation8 [shape = 'u8[4096]{0}', space=vmem, size = 0x1000, scoped, tag = 'output window, operand 0, single buffered']
    %10 = vsyncpa [#allocation3], 0
    %11 = vsyncpa [#allocation6], 0
    %12 = vsyncpa [#allocation4], 0
    // Predicated region
    $region2: #{tpu_custom_call.1} parent=1 // pred_check
      _
    $region3: #{tpu_custom_call.1} parent=1 // pred_check_branch
      %14 = sbr.rel (0) target = $region5
    $region4: #{tpu_custom_call.1} parent=1 // pred_region
      %s16 = ssub.s32 128, 32
      %17 = vsyncadd [#allocation3], %s16
      %s18 = sshll.u32 [#allocation2], 4
      %s19 = int_to_ptr.vmem [resolvable:$true] %s18
      %24 = dma.hbm_to_vmem [thread:$0]  %s0, 32, %s19, [#allocation3], 32, 32, 2
    $region5: #{tpu_custom_call.1} parent=1 // pred_fallthru
      _
    // Predicated region
    $region6: #{tpu_custom_call.1} parent=1 // pred_check
      _
    $region7: #{tpu_custom_call.1} parent=1 // pred_check_branch
      %26 = sbr.rel (0) target = $region9
    $region8: #{tpu_custom_call.1} parent=1 // pred_region
      %s28 = ssub.s32 256, 256
      %29 = vsyncadd [#allocation6], %s28
      %s30 = sshll.u32 [#allocation5], 4
      %s31 = int_to_ptr.vmem [resolvable:$true] %s30
      %36 = dma.hbm_to_vmem [thread:$0]  %s1, 256, %s31, [#allocation6], 128, 128, 8
    $region9: #{tpu_custom_call.1} parent=1 // pred_fallthru
      _
    // Predicated region
    $region10: #{tpu_custom_call.1} parent=1 // pred_check
      _
    $region11: #{tpu_custom_call.1} parent=1 // pred_check_branch
      %38 = sbr.rel (0) target = $region13
    $region12: #{tpu_custom_call.1} parent=1 // pred_region
      _
    $region13: #{tpu_custom_call.1} parent=1 // pred_fallthru
      _
    // Predicated region
    $region14: #{tpu_custom_call.1} parent=1 // pred_check
      _
    $region15: #{tpu_custom_call.1} parent=1 // pred_check_branch
      %40 = sbr.rel (0) target = $region17
    $region16: #{tpu_custom_call.1} parent=1 // pred_region
      %s42 = ssub.s32 2048, 2048
      %43 = vsyncadd [#allocation6], %s42
      %s44 = sshll.u32 [#allocation7], 4
      %s45 = int_to_ptr.vmem [resolvable:$true] %s44
      %50 = dma.hbm_to_vmem [thread:$0]  %s3, 2048, %s45, [#allocation6], 128, 128, 8
    $region17: #{tpu_custom_call.1} parent=1 // pred_fallthru
      _
    // Predicated region
    $region18: #{tpu_custom_call.1} parent=1 // pred_check
      _
    $region19: #{tpu_custom_call.1} parent=1 // pred_check_branch
      %52 = sbr.rel (0) target = $region21
    $region20: #{tpu_custom_call.1} parent=1 // pred_region
      _
    $region21: #{tpu_custom_call.1} parent=1 // pred_fallthru
      _
    // Predicated region
    $region22: #{tpu_custom_call.1} parent=1 // pred_check
      _
    $region23: #{tpu_custom_call.1} parent=1 // pred_check_branch
      %54 = sbr.rel (0) target = $region25
    $region24: #{tpu_custom_call.1} parent=1 // pred_region
      %55 = dma.done [#allocation3], 128
    $region25: #{tpu_custom_call.1} parent=1 // pred_fallthru
      _
    // Predicated region
    $region26: #{tpu_custom_call.1} parent=1 // pred_check
      _
    $region27: #{tpu_custom_call.1} parent=1 // pred_check_branch
      %57 = sbr.rel (0) target = $region29
    $region28: #{tpu_custom_call.1} parent=1 // pred_region
      %58 = dma.done [#allocation6], 256
    $region29: #{tpu_custom_call.1} parent=1 // pred_fallthru
      _
    // Predicated region
    $region30: #{tpu_custom_call.1} parent=1 // pred_check
      _
    $region31: #{tpu_custom_call.1} parent=1 // pred_check_branch
      %60 = sbr.rel (0) target = $region33
    $region32: #{tpu_custom_call.1} parent=1 // pred_region
      %61 = dma.done [#allocation6], 2048
    $region33: #{tpu_custom_call.1} parent=1 // pred_fallthru
      _
    %v62 = vld [vmem:[#allocation2] sm:$0xff]
    %v63 = vld [vmem:[#allocation5] sm:$0xff]
    %v64 = vld [vmem:[#allocation5 + $0x8] sm:$0xff]
    %v65 = vld [vmem:[%s2] sm:$0x1]
    %v67 = vlaneseq
    %v68 = vshrl.u32 %v67, 7
    %v69 = vsub.s32 0, %v68
    %v70 = vrot.slane %v65, %v69
    %vm72 = vcmask 130048
    %v74 = vsel %vm72, %v62, 0
    %76 = vmatprep.subr.mxu0 0.0
    %77 = vmatpush1.msra.mxu0 %v63
    %78 = vmatprep.subr.mxu0 0.0
    %79 = vmatpush1.msra.mxu0 %v64
    %80 = vmatprep.subr.mxu0 0.0
    %81 = vmatpush1.msra.mxu0 0.0
    %82 = vmatprep.subr.mxu0 0.0
    %83 = vmatpush1.msra.mxu0 0.0
    %84 = vmatprep.subr.mxu0 0.0
    %85 = vmatpush1.msra.mxu0 0.0
    %86 = vmatprep.subr.mxu0 0.0
    %87 = vmatpush1.msra.mxu0 0.0
    %88 = vmatprep.subr.mxu0 0.0
    %89 = vmatpush1.msra.mxu0 0.0
    %90 = vmatprep.subr.mxu0 0.0
    %91 = vmatpush1.msra.mxu0 0.0
    %92 = vmatprep.subr.mxu0 0.0
    %93 = vmatpush1.msra.mxu0 0.0
    %94 = vmatprep.subr.mxu0 0.0
    %95 = vmatpush1.msra.mxu0 0.0
    %96 = vmatprep.subr.mxu0 0.0
    %97 = vmatpush1.msra.mxu0 0.0
    %98 = vmatprep.subr.mxu0 0.0
    %99 = vmatpush1.msra.mxu0 0.0
    %100 = vmatprep.subr.mxu0 0.0
    %101 = vmatpush1.msra.mxu0 0.0
    %102 = vmatprep.subr.mxu0 0.0
    %103 = vmatpush1.msra.mxu0 0.0
    %104 = vmatprep.subr.mxu0 0.0
    %105 = vmatpush1.msra.mxu0 0.0
    %106 = vmatprep.subr.mxu0 0.0
    %107 = vmatpush1.msra.mxu0 0.0
    %108 = vmatprep.subr.mxu0 0.0
    %109 = vmatpush1.msra.mxu0 0.0
    %110 = vmatprep.subr.mxu0 0.0
    %111 = vmatpush1.msra.mxu0 0.0
    %112 = vmatprep.subr.mxu0 0.0
    %113 = vmatpush1.msra.mxu0 0.0
    %114 = vmatprep.subr.mxu0 0.0
    %115 = vmatpush1.msra.mxu0 0.0
    %116 = vmatprep.subr.mxu0 0.0
    %117 = vmatpush1.msra.mxu0 0.0
    %118 = vmatprep.subr.mxu0 0.0
    %119 = vmatpush1.msra.mxu0 0.0
    %120 = vmatprep.subr.mxu0 0.0
    %121 = vmatpush1.msra.mxu0 0.0
    %122 = vmatprep.subr.mxu0 0.0
    %123 = vmatpush1.msra.mxu0 0.0
    %124 = vmatprep.subr.mxu0 0.0
    %125 = vmatpush1.msra.mxu0 0.0
    %126 = vmatprep.subr.mxu0 0.0
    %127 = vmatpush1.msra.mxu0 0.0
    %128 = vmatprep.subr.mxu0 0.0
    %129 = vmatpush1.msra.mxu0 0.0
    %130 = vmatprep.subr.mxu0 0.0
    %131 = vmatpush1.msra.mxu0 0.0
    %132 = vmatprep.subr.mxu0 0.0
    %133 = vmatpush1.msra.mxu0 0.0
    %134 = vmatprep.subr.mxu0 0.0
    %135 = vmatpush1.msra.mxu0 0.0
    %136 = vmatprep.subr.mxu0 0.0
    %137 = vmatpush1.msra.mxu0 0.0
    %138 = vmatprep.subr.mxu0 0.0
    %139 = vmatpush1.msra.mxu0 0.0
    %140 = vmatprep.mubr.f32.mxu0 0.0
    %141 = vmatmul.mubr.f32.gmra.mrb[0].mxu0 %v74
    %v142 = vpop.f32.mrb[0].mxu0
    %v143 = vadd.f32 %v70, %v142
    %v144 = vpop.f32.mrb[0].mxu0
    %145 = vdwg.mxu0
    %v146 = vmax.f32 %v143, 0.0
    %v147 = vld [vmem:[#allocation7] sm:$0xff]
    %v148 = vld [vmem:[#allocation7 + $0x8] sm:$0xff]
    %v149 = vld [vmem:[#allocation7 + $0x10] sm:$0xff]
    %v150 = vld [vmem:[#allocation7 + $0x18] sm:$0xff]
    %v151 = vld [vmem:[#allocation7 + $0x20] sm:$0xff]
    %v152 = vld [vmem:[#allocation7 + $0x28] sm:$0xff]
    %v153 = vld [vmem:[#allocation7 + $0x30] sm:$0xff]
    %v154 = vld [vmem:[#allocation7 + $0x38] sm:$0xff]
    %v155 = vld [vmem:[#allocation7 + $0x40] sm:$0xff]
    %v156 = vld [vmem:[#allocation7 + $0x48] sm:$0xff]
    %v157 = vld [vmem:[#allocation7 + $0x50] sm:$0xff]
    %v158 = vld [vmem:[#allocation7 + $0x58] sm:$0xff]
    %v159 = vld [vmem:[#allocation7 + $0x60] sm:$0xff]
    %v160 = vld [vmem:[#allocation7 + $0x68] sm:$0xff]
    %v161 = vld [vmem:[#allocation7 + $0x70] sm:$0xff]
    %v162 = vld [vmem:[#allocation7 + $0x78] sm:$0xff]
    %163 = vmatprep.subr.mxu0 0.0
    %164 = vmatpush1.msra.mxu0 %v147
    %165 = vmatprep.subr.mxu0 0.0
    %166 = vmatpush1.msra.mxu0 %v148
    %167 = vmatprep.subr.mxu0 0.0
    %168 = vmatpush1.msra.mxu0 %v149
    %169 = vmatprep.subr.mxu0 0.0
    %170 = vmatpush1.msra.mxu0 %v150
    %171 = vmatprep.subr.mxu0 0.0
    %172 = vmatpush1.msra.mxu0 %v151
    %173 = vmatprep.subr.mxu0 0.0
    %174 = vmatpush1.msra.mxu0 %v152
    %175 = vmatprep.subr.mxu0 0.0
    %176 = vmatpush1.msra.mxu0 %v153
    %177 = vmatprep.subr.mxu0 0.0
    %178 = vmatpush1.msra.mxu0 %v154
    %179 = vmatprep.subr.mxu0 0.0
    %180 = vmatpush1.msra.mxu0 %v155
    %181 = vmatprep.subr.mxu0 0.0
    %182 = vmatpush1.msra.mxu0 %v156
    %183 = vmatprep.subr.mxu0 0.0
    %184 = vmatpush1.msra.mxu0 %v157
    %185 = vmatprep.subr.mxu0 0.0
    %186 = vmatpush1.msra.mxu0 %v158
    %187 = vmatprep.subr.mxu0 0.0
    %188 = vmatpush1.msra.mxu0 %v159
    %189 = vmatprep.subr.mxu0 0.0
    %190 = vmatpush1.msra.mxu0 %v160
    %191 = vmatprep.subr.mxu0 0.0
    %192 = vmatpush1.msra.mxu0 %v161
    %193 = vmatprep.subr.mxu0 0.0
    %194 = vmatpush1.msra.mxu0 %v162
    %195 = vmatprep.subr.mxu0 0.0
    %196 = vmatpush1.msra.mxu0 0.0
    %197 = vmatprep.subr.mxu0 0.0
    %198 = vmatpush1.msra.mxu0 0.0
    %199 = vmatprep.subr.mxu0 0.0
    %200 = vmatpush1.msra.mxu0 0.0
    %201 = vmatprep.subr.mxu0 0.0
    %202 = vmatpush1.msra.mxu0 0.0
    %203 = vmatprep.subr.mxu0 0.0
    %204 = vmatpush1.msra.mxu0 0.0
    %205 = vmatprep.subr.mxu0 0.0
    %206 = vmatpush1.msra.mxu0 0.0
    %207 = vmatprep.subr.mxu0 0.0
    %208 = vmatpush1.msra.mxu0 0.0
    %209 = vmatprep.subr.mxu0 0.0
    %210 = vmatpush1.msra.mxu0 0.0
    %211 = vmatprep.subr.mxu0 0.0
    %212 = vmatpush1.msra.mxu0 0.0
    %213 = vmatprep.subr.mxu0 0.0
    %214 = vmatpush1.msra.mxu0 0.0
    %215 = vmatprep.subr.mxu0 0.0
    %216 = vmatpush1.msra.mxu0 0.0
    %217 = vmatprep.subr.mxu0 0.0
    %218 = vmatpush1.msra.mxu0 0.0
    %219 = vmatprep.subr.mxu0 0.0
    %220 = vmatpush1.msra.mxu0 0.0
    %221 = vmatprep.subr.mxu0 0.0
    %222 = vmatpush1.msra.mxu0 0.0
    %223 = vmatprep.subr.mxu0 0.0
    %224 = vmatpush1.msra.mxu0 0.0
    %225 = vmatprep.subr.mxu0 0.0
    %226 = vmatpush1.msra.mxu0 0.0
    %227 = vmatprep.mubr.f32.mxu0 0.0
    %228 = vmatmul.mubr.f32.gmra.mrb[0].mxu0 %v146
    %v229 = vpop.f32.mrb[0].mxu0
    %v230 = vadd.f32 0.0, %v229
    %v231 = vpop.f32.mrb[0].mxu0
    %232 = vdwg.mxu0
    %v233 = vld [vmem:[%s4] sm:$0x1]
    %v235 = vlaneseq
    %v236 = vshrl.u32 %v235, 7
    %v237 = vsub.s32 0, %v236
    %v238 = vrot.slane %v233, %v237
    %v240 = vadd.f32 %v230, %v238
    %vm241 = vcmask 31744
    %242 = vst.msk [vmem:[#allocation8] sm:$0xff] %vm241, %v240
    // Predicated region
    $region34: #{tpu_custom_call.1} parent=1 // pred_check
      _
    $region35: #{tpu_custom_call.1} parent=1 // pred_check_branch
      %244 = sbr.rel (0) target = $region37
    $region36: #{tpu_custom_call.1} parent=1 // pred_region
      %s246 = ssub.s32 128, 32
      %247 = vsyncadd [#allocation4], %s246
      %s248 = sshll.u32 [#allocation8], 4
      %s249 = int_to_ptr.vmem [resolvable:$true] %s248
      %254 = dma.vmem_to_hbm [thread:$0]  %s249, 32, %s5, [#allocation4], 32, 32, 2
    $region37: #{tpu_custom_call.1} parent=1 // pred_fallthru
      _
    // Predicated region
    $region38: #{tpu_custom_call.1} parent=1 // pred_check
      _
    $region39: #{tpu_custom_call.1} parent=1 // pred_check_branch
      %256 = sbr.rel (0) target = $region41
    $region40: #{tpu_custom_call.1} parent=1 // pred_region
      %257 = dma.done [#allocation4], 128
    $region41: #{tpu_custom_call.1} parent=1 // pred_fallthru
      _
    %258 = vsyncpa [#allocation3], 1
    %259 = vsyncpa [#allocation6], 1
    %260 = vsyncpa [#allocation4], 1

</llo_original>
